<compile_context>
chip_gen: v7x
topology: tpu7x:2x2x1
jax: 0.10.0
libtpu: 0.0.40
codegen_flags: <defaults>
</compile_context>

<pallas_src>
import jax
import jax.numpy as jnp
import numpy as np
from jax.experimental import pallas as pl
from jax.experimental.pallas import tpu as pltpu

KH, KW = 3, 3  # kernel_size=(3, 3), stride=(1, 1), padding=(1, 1)


def _matmul_bn_relu_kernel(w_ref, scale_ref, shift_ref, p_ref, o_ref):
    """One output tile:  relu( (W @ P) * scale + shift ).

    w_ref:     (Cout_p, K)      bf16  conv weight, taps folded into K = KH*KW*Cin
    scale_ref: (Cout_p, 1)      f32   folded BN scale  (gamma / sqrt(var + eps))
    shift_ref: (Cout_p, 1)      f32   folded BN shift  (incl. conv bias)
    p_ref:     (1, K, TL)       bf16  im2col patches, lane dim TL (spatial)
    o_ref:     (1, Cout_p, TL)  f32   output tile, lane dim TL >= 128 (dense)
    """
    # Single deep-K MXU matmul, f32 accumulation.
    acc = jnp.dot(w_ref[...], p_ref[0], preferred_element_type=jnp.float32)
    # f32 epilogue on the VPU: folded BN affine + ReLU, broadcast per Cout row.
    o_ref[0] = jnp.maximum(acc * scale_ref[...] + shift_ref[...], 0.0)


def _round_up(x, m):
    return (x + m - 1) // m * m


def _pick_lane_tile(hw_pad, k, cout_pad, budget_bytes=24 * 1024 * 1024):
    """Largest 128-multiple spatial tile dividing hw_pad that fits the VMEM budget.

    Budget counts the double-buffered bf16 patch tile and f32 output tile
    (weights / scale / shift are resident and tiny by comparison).
    """
    for t in (2048, 1024, 512, 256, 128):
        if hw_pad % t:
            continue
        need = 2 * (k * t * 2) + 2 * (cout_pad * t * 4)
        if need <= budget_bytes:
            return t
    return 128  # hw_pad is always a multiple of 128


def _im2col_nchw(x_pad, H, W):
    """(N, Cin, H+2, W+2) -> (N, KH*KW*Cin, H*W); K index = (kh*KW + kw)*Cin + c."""
    N, Cin = x_pad.shape[0], x_pad.shape[1]
    cols = []
    for kh in range(KH):
        for kw in range(KW):
            cols.append(jax.lax.slice(x_pad, (0, 0, kh, kw),
                                      (N, Cin, kh + H, kw + W)))
    p = jnp.concatenate(cols, axis=1)              # (N, KH*KW*Cin, H, W)
    return p.reshape(N, KH * KW * Cin, H * W)


@jax.jit
def conv_block_forward(x_nchw, w_oihw, conv_b, gamma, beta, run_mean, run_var,
                       eps=1e-5):
    """ConvBlock.forward: relu(bn(conv(x))).  x_nchw: (N, Cin, H, W) f32."""
    N, Cin, H, W = x_nchw.shape
    Cout = w_oihw.shape[0]
    K = KH * KW * Cin
    HW = H * W

    Cout_p = _round_up(Cout, 8)      # f32 sublane alignment
    HW_p = _round_up(HW, 128)        # lane-dense stores for any H, W

    # --- glue (plain JAX, stays in NCHW; no layout transposes) -------------
    x_bf = x_nchw.astype(jnp.bfloat16)                       # bf16 MXU inputs
    x_pad = jnp.pad(x_bf, ((0, 0), (0, 0), (1, 1), (1, 1)))
    patches = _im2col_nchw(x_pad, H, W)                      # (N, K, HW) bf16
    if HW_p != HW:
        patches = jnp.pad(patches, ((0, 0), (0, 0), (0, HW_p - HW)))

    w_t = jnp.transpose(w_oihw, (0, 2, 3, 1)).reshape(Cout, K)  # (Cout, K)
    w_t = w_t.astype(jnp.bfloat16)

    inv_std = 1.0 / jnp.sqrt(run_var + eps)
    scale = (gamma * inv_std).astype(jnp.float32)
    shift = (beta + (conv_b - run_mean) * gamma * inv_std).astype(jnp.float32)

    if Cout_p != Cout:
        w_t = jnp.pad(w_t, ((0, Cout_p - Cout), (0, 0)))
        scale = jnp.pad(scale, (0, Cout_p - Cout))
        shift = jnp.pad(shift, (0, Cout_p - Cout))
    scale = scale.reshape(Cout_p, 1)
    shift = shift.reshape(Cout_p, 1)

    TL = _pick_lane_tile(HW_p, K, Cout_p)
    n_l = HW_p // TL

    out = pl.pallas_call(
        _matmul_bn_relu_kernel,
        out_shape=jax.ShapeDtypeStruct((N, Cout_p, HW_p), jnp.float32),
        grid=(N, n_l),
        in_specs=[
            # Constant index_maps: weight / scale / shift stay VMEM-resident
            # across the whole grid (no re-DMA per step).
            pl.BlockSpec((Cout_p, K), lambda n, l: (0, 0)),
            pl.BlockSpec((Cout_p, 1), lambda n, l: (0, 0)),
            pl.BlockSpec((Cout_p, 1), lambda n, l: (0, 0)),
            pl.BlockSpec((1, K, TL), lambda n, l: (n, 0, l)),
        ],
        out_specs=pl.BlockSpec((1, Cout_p, TL), lambda n, l: (n, 0, l)),
        compiler_params=pltpu.CompilerParams(
            # Every (n, l) writes a distinct output tile exactly once.
            dimension_semantics=("parallel", "parallel")),
    )(w_t, scale, shift, patches)

    # (N, Cout, HW) is already channel-major: slice off padding, free reshape.
    return out[:, :Cout, :HW].reshape(N, Cout, H, W)


def _reference(x_nchw, w_oihw, conv_b, gamma, beta, run_mean, run_var,
               eps=1e-5):
    y = jax.lax.conv_general_dilated(
        x_nchw, w_oihw, window_strides=(1, 1), padding=((1, 1), (1, 1)),
        dimension_numbers=("NCHW", "OIHW", "NCHW"),
        precision=jax.lax.Precision.HIGHEST)
    y = y + conv_b[None, :, None, None]
    y = (y - run_mean[None, :, None, None]) / jnp.sqrt(
        run_var[None, :, None, None] + eps)
    y = y * gamma[None, :, None, None] + beta[None, :, None, None]
    return jnp.maximum(y, 0.0)


if __name__ == "__main__":
    key = jax.random.PRNGKey(0)
    k_x, k_w, k_b, k_g, k_be, k_m, k_v = jax.random.split(key, 7)

    N, Cin, Cout, H, W = 2, 4, 8, 16, 16

    x = jax.random.normal(k_x, (N, Cin, H, W), jnp.float32)

    # Conv2d(in=4, out=8, kernel=(3,3)) parameters (PyTorch-style fan_in init)
    fan_in = Cin * KH * KW
    bound = 1.0 / np.sqrt(fan_in)
    w_oihw = jax.random.uniform(k_w, (Cout, Cin, KH, KW), jnp.float32,
                                -bound, bound)
    conv_b = jax.random.uniform(k_b, (Cout,), jnp.float32, -bound, bound)

    # BatchNorm2d(8) parameters / running stats (deterministic, non-trivial)
    gamma = 1.0 + 0.1 * jax.random.normal(k_g, (Cout,), jnp.float32)
    beta = 0.1 * jax.random.normal(k_be, (Cout,), jnp.float32)
    run_mean = 0.1 * jax.random.normal(k_m, (Cout,), jnp.float32)
    run_var = jax.random.uniform(k_v, (Cout,), jnp.float32, 0.5, 1.5)

    out = conv_block_forward(x, w_oihw, conv_b, gamma, beta, run_mean, run_var)
    out = jax.block_until_ready(out)
    assert out.shape == (N, Cout, H, W), out.shape

    # Reference computed with the same bf16-rounded conv inputs the kernel
    # feeds to the MXU (accumulation / BN / ReLU are f32 in both), so only
    # summation order differs.
    x_r = x.astype(jnp.bfloat16).astype(jnp.float32)
    w_r = w_oihw.astype(jnp.bfloat16).astype(jnp.float32)
    ref = _reference(x_r, w_r, conv_b, gamma, beta, run_mean, run_var)
    err = float(jnp.max(jnp.abs(out - ref)))
    assert err < 1e-4, f"max abs err {err}"

    print("KERNEL_OK")
</pallas_src>

<mosaic_0001>
module attributes {stable_mosaic.version = 11 : i64} {
  func.func @_matmul_bn_relu_kernel(%arg0: i32, %arg1: i32, %arg2: memref<8x36xbf16, #tpu.memory_space<vmem>>, %arg3: memref<8x1xf32, #tpu.memory_space<vmem>>, %arg4: memref<8x1xf32, #tpu.memory_space<vmem>>, %arg5: memref<1x36x256xbf16, #tpu.memory_space<vmem>>, %arg6: memref<1x8x256xf32, #tpu.memory_space<vmem>>) attributes {dimension_semantics = [#tpu.dimension_semantics<parallel>, #tpu.dimension_semantics<parallel>], iteration_bounds = array<i64: 2, 1>, scalar_prefetch = 0 : i64, scratch_operands = 0 : i64, tpu.core_type = #tpu.core_type<tc>, window_params = [{pipeline_mode = #tpu.pipeline_mode<synchronous>, transform_indices = @transform_0, window_bounds = array<i64: 8, 36>}, {pipeline_mode = #tpu.pipeline_mode<synchronous>, transform_indices = @transform_1, window_bounds = array<i64: 8, 1>}, {pipeline_mode = #tpu.pipeline_mode<synchronous>, transform_indices = @transform_2, window_bounds = array<i64: 8, 1>}, {transform_indices = @transform_3, window_bounds = array<i64: 1, 36, 256>}, {transform_indices = @transform_4, window_bounds = array<i64: 1, 8, 256>}]} {
    %c0 = arith.constant 0 : index
    %c0_0 = arith.constant 0 : index
    %0 = vector.load %arg2[%c0, %c0_0] : memref<8x36xbf16, #tpu.memory_space<vmem>>, vector<8x36xbf16>
    %c0_1 = arith.constant 0 : index
    %c0_2 = arith.constant 0 : index
    %c0_3 = arith.constant 0 : index
    %1 = vector.load %arg5[%c0_1, %c0_2, %c0_3] : memref<1x36x256xbf16, #tpu.memory_space<vmem>>, vector<1x36x256xbf16>
    %2 = vector.shape_cast %1 : vector<1x36x256xbf16> to vector<36x256xbf16>
    %cst = arith.constant dense<0.000000e+00> : vector<8x256xf32>
    %3 = tpu.matmul %0, %2, %cst {dimension_numbers = #tpu.dot_dimension_numbers<[1], [0], [0], [1], [0, 0, 1, 1], [], []>} : vector<8x36xbf16>, vector<36x256xbf16>, vector<8x256xf32> -> vector<8x256xf32>
    %c0_4 = arith.constant 0 : index
    %c0_5 = arith.constant 0 : index
    %4 = vector.load %arg3[%c0_4, %c0_5] : memref<8x1xf32, #tpu.memory_space<vmem>>, vector<8x1xf32>
    %5 = vector.broadcast %4 : vector<8x1xf32> to vector<8x256xf32>
    %6 = arith.mulf %3, %5 : vector<8x256xf32>
    %c0_6 = arith.constant 0 : index
    %c0_7 = arith.constant 0 : index
    %7 = vector.load %arg4[%c0_6, %c0_7] : memref<8x1xf32, #tpu.memory_space<vmem>>, vector<8x1xf32>
    %8 = vector.broadcast %7 : vector<8x1xf32> to vector<8x256xf32>
    %9 = arith.addf %6, %8 : vector<8x256xf32>
    %cst_8 = arith.constant 0.000000e+00 : f32
    %10 = vector.broadcast %cst_8 : f32 to vector<8x256xf32>
    %11 = arith.maximumf %9, %10 : vector<8x256xf32>
    %c0_9 = arith.constant 0 : index
    %c0_10 = arith.constant 0 : index
    %c0_11 = arith.constant 0 : index
    %12 = vector.load %arg6[%c0_9, %c0_10, %c0_11] : memref<1x8x256xf32, #tpu.memory_space<vmem>>, vector<1x8x256xf32>
    %13 = vector.shape_cast %12 : vector<1x8x256xf32> to vector<8x256xf32>
    %14 = vector.shape_cast %11 : vector<8x256xf32> to vector<1x8x256xf32>
    tpu.vector_store %arg6[%c0_9, %c0_10, %c0_11], %14 {strides = array<i32>} : memref<1x8x256xf32, #tpu.memory_space<vmem>>, vector<1x8x256xf32>,
    return
  }
  func.func @transform_0(%arg0: i32, %arg1: i32) -> (i32, i32) {
    %c0_i32 = arith.constant 0 : i32
    %c0_i32_0 = arith.constant 0 : i32
    %c0_i32_1 = arith.constant 0 : i32
    return %c0_i32, %c0_i32_0 : i32, i32
  }
  func.func @transform_1(%arg0: i32, %arg1: i32) -> (i32, i32) {
    %c0_i32 = arith.constant 0 : i32
    %c0_i32_0 = arith.constant 0 : i32
    %c0_i32_1 = arith.constant 0 : i32
    return %c0_i32, %c0_i32_0 : i32, i32
  }
  func.func @transform_2(%arg0: i32, %arg1: i32) -> (i32, i32) {
    %c0_i32 = arith.constant 0 : i32
    %c0_i32_0 = arith.constant 0 : i32
    %c0_i32_1 = arith.constant 0 : i32
    return %c0_i32, %c0_i32_0 : i32, i32
  }
  func.func @transform_3(%arg0: i32, %arg1: i32) -> (i32, i32, i32) {
    %c0_i32 = arith.constant 0 : i32
    %c0_i32_0 = arith.constant 0 : i32
    return %arg0, %c0_i32, %arg1 : i32, i32, i32
  }
  func.func @transform_4(%arg0: i32, %arg1: i32) -> (i32, i32, i32) {
    %c0_i32 = arith.constant 0 : i32
    %c0_i32_0 = arith.constant 0 : i32
    return %arg0, %c0_i32, %arg1 : i32, i32, i32
  }
}

</mosaic_0001>

<llo_original>
// kernel: conv_block_forward.1
$region0: #{conv_block_forward.1}
  #allocation0 [shape = 'u32[]', space=smem, size = 0x4, offset = 0x4, fixed_abs, tag = 'smem constant byte address 0x4 - core index']
  #allocation1 [shape = 'u32[144,128]{1,0:T(1,128)}', space=vmem, size = 0x12000, scoped, tag = 'internal scratch']
  %s0 = inlined_call_operand.vmem [shape: bf16[8,36], index: 0, kind: input, shape index: {}]
  %s1 = inlined_call_operand.vmem [shape: f32[8,1], index: 1, kind: input, shape index: {}]
  %s2 = inlined_call_operand.vmem [shape: f32[8,1], index: 2, kind: input, shape index: {}]
  %s3 = inlined_call_operand.vmem [shape: bf16[2,36,256], index: 3, kind: input, shape index: {}]
  %s4 = inlined_call_operand.vmem [shape: f32[2,8,256], index: 4, kind: output, shape index: {}]
  %s5 = sld [smem:[#allocation0]]
  $region49: #{conv_block_forward.1} parent=0
    _
  %s7 = ssub.s32 1, %s5
  %s8 = scalar_select 0, %s7, %s5
  loop: start=0, step=1, limit=4
  $region2: #{conv_block_forward.1} parent=0 // loop_pre_header
    _
  $region3: #{conv_block_forward.1} parent=0 // loop_header
    %s10 = sphi 0, %s14
    %p11 = scmp.ge.s32.totalorder %s10, 4
    %s17 = sphi 0, %s29
    %s18 = sphi 0, %s25
    %s19 = sphi 0, %s17
    %s20 = sphi 0, %s18
    %s21 = sphi 0, %s19
    %s22 = sphi 0, %s20
    %s30 = sphi 0, %s30
    %s32 = sphi 0, %s30
    %s33 = sphi 0, %s32
    %s47 = sphi 0, %s33
    %s51 = sphi 0, %s51
    %s53 = sphi 0, %s51
    %s54 = sphi 0, %s53
    %s68 = sphi 0, %s54
    %s72 = sphi 0, %s72
    %s74 = sphi 0, %s72
    %s75 = sphi 0, %s74
    %s89 = sphi 0, %s75
    %s97 = sphi 0, %s99
    %s100 = sphi 0, %s97
    %s101 = sphi 0, %s100
    %s117 = sphi 0, %s101
    %s125 = sphi 0, %s127
    %s128 = sphi 0, %s125
    %s129 = sphi 0, %s128
    %s145 = sphi 0, %s129
  $region4: #{conv_block_forward.1} parent=0 // loop_header_branch
    %13 = sbr.rel (%p11) target = $region8
  $region5: #{conv_block_forward.1} parent=0 // loop_body
    %s15 = ssub.s32 %s10, 1
    %s16 = ssub.s32 %s10, 2
    %s23 = sadd.s32 1, %s18
    %p24 = scmp.ge.s32.totalorder %s23, 1
    %s25 = scalar_select %p24, 0, %s23
    %s26 = sadd.s32 1, %s17
    %s27 = scalar_select %p24, %s26, %s17
    %p28 = scmp.ge.s32.totalorder %s27, 2
    %s29 = scalar_select %p28, 0, %s27
    %s31 = sadd.s32 %s30, 1
    %p34 = scmp.eq.s32.totalorder %s10, 1
    %p35 = scmp.ne.s32.totalorder %s30, %s32
    %p36 = scmp.eq.s32.totalorder %s10, 0
    %p37 = por %p35, %p36
    %p38 = scmp.ne.s32.totalorder %s30, %s32
    %p39 = scmp.eq.s32.totalorder %s15, 1
    %p40 = por %p38, %p39
    %p41 = scmp.ne.s32.totalorder %s32, %s33
    %p42 = scmp.eq.s32.totalorder %s15, 0
    %p43 = por %p41, %p42
    %p44 = scmp.ne.s32.totalorder %s32, %s33
    %p45 = scmp.eq.s32.totalorder %s16, 1
    %p46 = por %p44, %p45
    %p48 = scmp.ne.s32.totalorder %s33, %s47
    %p49 = scmp.eq.s32.totalorder %s16, 0
    %p50 = por %p48, %p49
    %s52 = sadd.s32 %s51, 1
    %p55 = scmp.eq.s32.totalorder %s10, 1
    %p56 = scmp.ne.s32.totalorder %s51, %s53
    %p57 = scmp.eq.s32.totalorder %s10, 0
    %p58 = por %p56, %p57
    %p59 = scmp.ne.s32.totalorder %s51, %s53
    %p60 = scmp.eq.s32.totalorder %s15, 1
    %p61 = por %p59, %p60
    %p62 = scmp.ne.s32.totalorder %s53, %s54
    %p63 = scmp.eq.s32.totalorder %s15, 0
    %p64 = por %p62, %p63
    %p65 = scmp.ne.s32.totalorder %s53, %s54
    %p66 = scmp.eq.s32.totalorder %s16, 1
    %p67 = por %p65, %p66
    %p69 = scmp.ne.s32.totalorder %s54, %s68
    %p70 = scmp.eq.s32.totalorder %s16, 0
    %p71 = por %p69, %p70
    %s73 = sadd.s32 %s72, 1
    %p76 = scmp.eq.s32.totalorder %s10, 1
    %p77 = scmp.ne.s32.totalorder %s72, %s74
    %p78 = scmp.eq.s32.totalorder %s10, 0
    %p79 = por %p77, %p78
    %p80 = scmp.ne.s32.totalorder %s72, %s74
    %p81 = scmp.eq.s32.totalorder %s15, 1
    %p82 = por %p80, %p81
    %p83 = scmp.ne.s32.totalorder %s74, %s75
    %p84 = scmp.eq.s32.totalorder %s15, 0
    %p85 = por %p83, %p84
    %p86 = scmp.ne.s32.totalorder %s74, %s75
    %p87 = scmp.eq.s32.totalorder %s16, 1
    %p88 = por %p86, %p87
    %p90 = scmp.ne.s32.totalorder %s75, %s89
    %p91 = scmp.eq.s32.totalorder %s16, 0
    %p92 = por %p90, %p91
    %s93 = ssub.s32 %s17, %s29
    %s94 = ssub.s32 %s18, %s25
    %s95 = sor.u32 %s93, %s94
    %p96 = scmp.eq.s32.totalorder %s95, 0
    %s98 = sadd.s32 %s97, 1
    %s99 = scalar_select %p96, %s97, %s98
    %p102 = pneg %p96
    %p103 = scmp.eq.s32.totalorder %s10, 1
    %p104 = por %p102, %p103
    %p105 = scmp.ne.s32.totalorder %s97, %s100
    %p106 = scmp.eq.s32.totalorder %s10, 0
    %p107 = por %p105, %p106
    %p108 = scmp.ne.s32.totalorder %s97, %s100
    %p109 = scmp.eq.s32.totalorder %s15, 1
    %p110 = por %p108, %p109
    %p111 = scmp.ne.s32.totalorder %s100, %s101
    %p112 = scmp.eq.s32.totalorder %s15, 0
    %p113 = por %p111, %p112
    %p114 = scmp.ne.s32.totalorder %s100, %s101
    %p115 = scmp.eq.s32.totalorder %s16, 1
    %p116 = por %p114, %p115
    %p118 = scmp.ne.s32.totalorder %s101, %s117
    %p119 = scmp.eq.s32.totalorder %s16, 0
    %p120 = por %p118, %p119
    %s121 = ssub.s32 %s17, %s29
    %s122 = ssub.s32 %s18, %s25
    %s123 = sor.u32 %s121, %s122
    %p124 = scmp.eq.s32.totalorder %s123, 0
    %s126 = sadd.s32 %s125, 1
    %s127 = scalar_select %p124, %s125, %s126
    %p130 = pneg %p124
    %p131 = scmp.eq.s32.totalorder %s10, 1
    %p132 = por %p130, %p131
    %p133 = scmp.ne.s32.totalorder %s125, %s128
    %p134 = scmp.eq.s32.totalorder %s10, 0
    %p135 = por %p133, %p134
    %p136 = scmp.ne.s32.totalorder %s125, %s128
    %p137 = scmp.eq.s32.totalorder %s15, 1
    %p138 = por %p136, %p137
    %p139 = scmp.ne.s32.totalorder %s128, %s129
    %p140 = scmp.eq.s32.totalorder %s15, 0
    %p141 = por %p139, %p140
    %p142 = scmp.ne.s32.totalorder %s128, %s129
    %p143 = scmp.eq.s32.totalorder %s16, 1
    %p144 = por %p142, %p143
    %p146 = scmp.ne.s32.totalorder %s129, %s145
    %p147 = scmp.eq.s32.totalorder %s16, 0
    %p148 = por %p146, %p147
    %p149 = scmp.le.s32.totalorder 1, %s10
    %p150 = scmp.lt.s32.totalorder %s10, 3
    %p151 = pnand %p149, %p150
    %p152 = pneg %p151
    // Predicated region
    $region9: #{conv_block_forward.1} parent=5 // pred_check
      _
    $region10: #{conv_block_forward.1} parent=5 // pred_check_branch
      %154 = sbr.rel (%p151) target = $region12
    $region11: #{conv_block_forward.1} parent=5 // pred_region
      %s155 = ssub.s32 %s10, 1
      // Predicated region
      $region13: #{conv_block_forward.1} parent=11 // pred_check
        %p156 = pneg %p43
      $region14: #{conv_block_forward.1} parent=11 // pred_check_branch
        %158 = sbr.rel (%p156) target = $region16
      $region15: #{conv_block_forward.1} parent=11 // pred_region
        _
      $region16: #{conv_block_forward.1} parent=11 // pred_fallthru
        _
      // Predicated region
      $region17: #{conv_block_forward.1} parent=11 // pred_check
        %p159 = pneg %p64
      $region18: #{conv_block_forward.1} parent=11 // pred_check_branch
        %161 = sbr.rel (%p159) target = $region20
      $region19: #{conv_block_forward.1} parent=11 // pred_region
        _
      $region20: #{conv_block_forward.1} parent=11 // pred_fallthru
        _
      // Predicated region
      $region21: #{conv_block_forward.1} parent=11 // pred_check
        %p162 = pneg %p85
      $region22: #{conv_block_forward.1} parent=11 // pred_check_branch
        %164 = sbr.rel (%p162) target = $region24
      $region23: #{conv_block_forward.1} parent=11 // pred_region
        _
      $region24: #{conv_block_forward.1} parent=11 // pred_fallthru
        _
    $region12: #{conv_block_forward.1} parent=5 // pred_fallthru
      _
    %p165 = scmp.lt.s32.totalorder %s10, 2
    // Predicated region
    $region25: #{conv_block_forward.1} parent=5 // pred_check
      %p166 = pneg %p165
    $region26: #{conv_block_forward.1} parent=5 // pred_check_branch
      %168 = sbr.rel (%p166) target = $region28
    $region27: #{conv_block_forward.1} parent=5 // pred_region
      // Predicated region
      $region29: #{conv_block_forward.1} parent=27 // pred_check
        %p169 = pneg %p107
      $region30: #{conv_block_forward.1} parent=27 // pred_check_branch
        %171 = sbr.rel (%p169) target = $region32
      $region31: #{conv_block_forward.1} parent=27 // pred_region
        %s172 = smul.u32 2, %s18
        %p173 = scmp.lt.s32.totalorder %s17, 1
        %s174 = scalar_select %p173, %s17, 1
        %p175 = scmp.lt.s32.totalorder %s172, 1
        %s176 = scalar_select %p175, %s172, 1
        %s177 = smul.addr %s174, 10
        %s178 = sadd.s32 %s176, %s177
        %s179 = smul.addr %s178, 4
        %s180 = scalar_lea.vmem %s3, %s179
        %s181 = smul.u32 2, %s18
      $region32: #{conv_block_forward.1} parent=27 // pred_fallthru
        _
    $region28: #{conv_block_forward.1} parent=5 // pred_fallthru
      _
    %p182 = scmp.le.s32.totalorder 1, %s10
    %p183 = scmp.lt.s32.totalorder %s10, 3
    %p184 = pnand %p182, %p183
    %p185 = pneg %p184
    // Predicated region
    $region33: #{conv_block_forward.1} parent=5 // pred_check
      _
    $region34: #{conv_block_forward.1} parent=5 // pred_check_branch
      %187 = sbr.rel (%p184) target = $region36
    $region35: #{conv_block_forward.1} parent=5 // pred_region
      %s188 = ssub.s32 %s10, 1
      %p189 = pneg %p43
      %p190 = pneg %p40
      %p191 = pneg %p64
      %p192 = pneg %p61
      %p193 = pneg %p85
      %p194 = pneg %p82
      %s195 = smul.u32 2, %s20
      %p196 = scmp.lt.s32.totalorder %s19, 1
      %s197 = scalar_select %p196, %s19, 1
      %p198 = scmp.lt.s32.totalorder %s195, 1
      %s199 = scalar_select %p198, %s195, 1
      %s200 = smul.addr %s197, 10
      %s201 = sadd.s32 %s199, %s200
      %s202 = smul.addr %s201, 4
      %s203 = scalar_lea.vmem %s3, %s202
      %p204 = pneg %p113
      %p205 = pneg %p110
      %p206 = pneg %p141
      %p207 = pneg %p138
      %s208 = smul.u32 2, %s20
      %p209 = scmp.lt.s32.totalorder %s19, 1
      %s210 = scalar_select %p209, %s19, 1
      %p211 = scmp.lt.s32.totalorder %s208, 1
      %s212 = scalar_select %p211, %s208, 1
      %s213 = smul.addr %s210, 2
      %s214 = sadd.s32 %s212, %s213
      %s215 = smul.addr %s214, 8
      %s216 = scalar_lea.vmem %s4, %s215
      %s217 = smul.u32 2, %s20
      %p218 = scmp.lt.s32.totalorder %s19, 1
      %s219 = scalar_select %p218, %s19, 1
      %p220 = scmp.lt.s32.totalorder %s217, 1
      %s221 = scalar_select %p220, %s217, 1
      %s222 = smul.addr %s219, 10
      %s223 = sadd.s32 %s221, %s222
      %s224 = smul.addr %s223, 4
      %s225 = scalar_lea.vmem %s3, %s224
      %s226 = smul.u32 2, %s20
      %s227 = smul.u32 2, %s20
      %p228 = scmp.lt.s32.totalorder %s19, 1
      %s229 = scalar_select %p228, %s19, 1
      %p230 = scmp.lt.s32.totalorder %s227, 1
      %s231 = scalar_select %p230, %s227, 1
      %s232 = smul.addr %s229, 2
      %s233 = sadd.s32 %s231, %s232
      %s234 = smul.addr %s233, 8
      %s235 = scalar_lea.vmem %s4, %s234
      %s236 = smul.u32 2, %s20
      %v238 = vld [vmem:[%s0] sm:$0xf]
      %v239 = vld [vmem:[%s225] sm:$0xff]
      %v240 = vld [vmem:[%s225 + $0x8] sm:$0xff]
      %v241 = vld [vmem:[%s225 + $0x10] sm:$0xff]
      %v242 = vld [vmem:[%s225 + $0x18] sm:$0xff]
      %v243 = vld [vmem:[%s225 + $0x20] sm:$0x33]
      %v249 = vunpack.c.l.b16 %v239
      %v250 = vunpack.c.h.b16 %v239
      %v251 = vunpack.c.l.b16 %v240
      %v252 = vunpack.c.h.b16 %v240
      %v253 = vunpack.c.l.b16 %v241
      %v254 = vunpack.c.h.b16 %v241
      %v255 = vunpack.c.l.b16 %v242
      %v256 = vunpack.c.h.b16 %v242
      %v257 = vunpack.c.l.b16 %v243
      %v258 = vunpack.c.h.b16 %v243
      %v259 = vpack.c.b16 %v251, %v249
      %v260 = vpack.c.b16 %v252, %v250
      %v261 = vpack.c.b16 %v255, %v253
      %v262 = vpack.c.b16 %v256, %v254
      %v263 = vpack.c.b16 %v257, %v257
      %v264 = vpack.c.b16 %v258, %v258
      %vm269 = vcmask 293888
      %v271 = vsel %vm269, %v238, 0
      %vm273 = vcmask 1041408
      %v275 = vsel %vm273, %v263, 0
      %v278 = vsel %vm273, %v264, 0
      %280 = vmatprep.subr.bf16.mxu0 %v260
      %281 = vmatpush1.bf16.msra.mxu0 %v259
      %282 = vmatprep.subr.bf16.mxu0 %v262
      %283 = vmatpush1.bf16.msra.mxu0 %v261
      %284 = vmatprep.subr.bf16.mxu0 %v278
      %285 = vmatpush1.bf16.msra.mxu0 %v275
      %286 = vmatprep.subr.bf16.mxu0 0
      %287 = vmatpush1.bf16.msra.mxu0 0
      %288 = vmatprep.subr.bf16.mxu0 0
      %289 = vmatpush1.bf16.msra.mxu0 0
      %290 = vmatprep.subr.bf16.mxu0 0
      %291 = vmatpush1.bf16.msra.mxu0 0
      %292 = vmatprep.subr.bf16.mxu0 0
      %293 = vmatpush1.bf16.msra.mxu0 0
      %294 = vmatprep.subr.bf16.mxu0 0
      %295 = vmatpush1.bf16.msra.mxu0 0
      %296 = vmatprep.subr.bf16.mxu0 0
      %297 = vmatpush1.bf16.msra.mxu0 0
      %298 = vmatprep.subr.bf16.mxu0 0
      %299 = vmatpush1.bf16.msra.mxu0 0
      %300 = vmatprep.subr.bf16.mxu0 0
      %301 = vmatpush1.bf16.msra.mxu0 0
      %302 = vmatprep.subr.bf16.mxu0 0
      %303 = vmatpush1.bf16.msra.mxu0 0
      %304 = vmatprep.subr.bf16.mxu0 0
      %305 = vmatpush1.bf16.msra.mxu0 0
      %306 = vmatprep.subr.bf16.mxu0 0
      %307 = vmatpush1.bf16.msra.mxu0 0
      %308 = vmatprep.subr.bf16.mxu0 0
      %309 = vmatpush1.bf16.msra.mxu0 0
      %310 = vmatprep.subr.bf16.mxu0 0
      %311 = vmatpush1.bf16.msra.mxu0 0
      %312 = vmatprep.mubr.bf16.mxu0 0
      %313 = vmatmul.mubr.bf16.gmra.mrb[0].mxu0 %v271
      %v314 = vpop.f32.mrb[0].mxu0
      %v315 = vadd.f32 0.0, %v314
      %v316 = vpop.f32.mrb[0].mxu0
      %v317 = vadd.f32 0.0, %v316
      %v318 = vpop.f32.mrb[0].mxu0
      %v319 = vpop.f32.mrb[0].mxu0
      %320 = vdwg.mxu0
      %v321 = vld [vmem:[%s1] sm:$0xff]
      %323 = vset.pattern.permute.xlu0 0
      %324 = vperm.xlu0 %323, %v321
      %v325 = vpop.permute.xlu0 %324
      %v327 = vmul.f32 %v315, %v325
      %v328 = vmul.f32 %v317, %v325
      %v329 = vld [vmem:[%s2] sm:$0xff]
      %331 = vset.pattern.permute.xlu0 0
      %332 = vperm.xlu0 %331, %v329
      %v333 = vpop.permute.xlu0 %332
      %v335 = vadd.f32 %v327, %v333
      %v336 = vadd.f32 %v328, %v333
      %v337 = vmax.f32 %v335, 0.0
      %v338 = vmax.f32 %v336, 0.0
      %339 = vst [vmem:[%s235] sm:$0xff] %v337
      %340 = vst [vmem:[%s235 + $0x8] sm:$0xff] %v338
      %s341 = smul.u32 2, %s20
      %p342 = scmp.lt.s32.totalorder %s19, 1
      %s343 = scalar_select %p342, %s19, 1
      %p344 = scmp.lt.s32.totalorder %s341, 1
      %s345 = scalar_select %p344, %s341, 1
      %s346 = smul.addr %s343, 2
      %s347 = sadd.s32 %s345, %s346
      %s348 = smul.addr %s347, 8
      %s349 = scalar_lea.vmem %s4, %s348
      // Predicated region
      $region37: #{conv_block_forward.1} parent=35 // pred_check
        %p350 = pneg %p138
      $region38: #{conv_block_forward.1} parent=35 // pred_check_branch
        %352 = sbr.rel (%p350) target = $region40
      $region39: #{conv_block_forward.1} parent=35 // pred_region
        %s353 = smul.u32 2, %s20
      $region40: #{conv_block_forward.1} parent=35 // pred_fallthru
        _
    $region36: #{conv_block_forward.1} parent=5 // pred_fallthru
      _
    %p354 = scmp.le.s32.totalorder 2, %s10
    // Predicated region
    $region41: #{conv_block_forward.1} parent=5 // pred_check
      %p355 = pneg %p354
    $region42: #{conv_block_forward.1} parent=5 // pred_check_branch
      %357 = sbr.rel (%p355) target = $region44
    $region43: #{conv_block_forward.1} parent=5 // pred_region
      %s358 = ssub.s32 %s10, 2
      // Predicated region
      $region45: #{conv_block_forward.1} parent=43 // pred_check
        %p359 = pneg %p144
      $region46: #{conv_block_forward.1} parent=43 // pred_check_branch
        %361 = sbr.rel (%p359) target = $region48
      $region47: #{conv_block_forward.1} parent=43 // pred_region
        %s362 = smul.u32 2, %s22
        %p363 = scmp.lt.s32.totalorder %s21, 1
        %s364 = scalar_select %p363, %s21, 1
        %p365 = scmp.lt.s32.totalorder %s362, 1
        %s366 = scalar_select %p365, %s362, 1
        %s367 = smul.addr %s364, 2
        %s368 = sadd.s32 %s366, %s367
        %s369 = smul.addr %s368, 8
        %s370 = scalar_lea.vmem %s4, %s369
      $region48: #{conv_block_forward.1} parent=43 // pred_fallthru
        _
    $region44: #{conv_block_forward.1} parent=5 // pred_fallthru
      _
  $region6: #{conv_block_forward.1} parent=0 // loop_footer
    %s14 = sadd.s32 1, %s10
  $region7: #{conv_block_forward.1} parent=0 // loop_footer_branch
    %9 = sbr.rel target = $region3
  $region8: #{conv_block_forward.1} parent=0 // loop_exit
    _

</llo_original>
